<compile_context>
chip_gen: v5e
topology: v5e:2x2
jax: 0.10.0
libtpu: 0.0.40
codegen_flags: <defaults>
</compile_context>

<pallas_src>
import math

import jax
import jax.numpy as jnp
from jax.experimental import pallas as pl
from jax.experimental.pallas import tpu as pltpu

_MIN_NORM = 1e-5     # hyptorch pmath clamp_min on norms
_BALL_EPS = 1e-3     # hyptorch pmath project() boundary epsilon (float32)


def _round_up(n, m):
    return ((n + m - 1) // m) * m


def _cdiv(a, b):
    return -(-a // b)


def _tpu_caps():
    """Best-effort (physical VMEM bytes, TensorCores per chip)."""
    kind = ""
    try:
        kind = jax.devices()[0].device_kind.lower()
    except Exception:
        pass
    is_v7 = "7" in kind
    vmem_cap = (64 if is_v7 else 128) * 1024 * 1024
    num_tc = 2 if is_v7 else 1
    try:  # prefer the exact figure when the runtime reports it
        vmem_cap = int(pltpu.get_tpu_info().vmem_capacity_bytes)
    except Exception:
        pass
    return vmem_cap, num_tc


def _mix_hyp_equal_linear_kernel(scal_ref, x_ref, w_ref, b_ref, o_ref, acc_ref):
    """Grid = (batch tiles, K tiles).  scal_ref (SMEM): [scale, lr_mul, c].

    x_ref: (tb, tk); w_ref: (tk, dout_pad) -- pre-transposed, so the MXU RHS
    arrives K-on-sublanes / N-on-lanes with no in-kernel transpose;
    b_ref: (1, dout_pad); acc_ref: f32 (tb, dout_pad) VMEM accumulator.
    """
    k = pl.program_id(1)
    nk = pl.num_programs(1)

    @pl.when(k == 0)
    def _init():
        acc_ref[...] = jnp.zeros_like(acc_ref)

    # Native-dtype MXU matmul, f32 accumulate.  No transpose in the kernel.
    acc_ref[...] += jnp.dot(x_ref[...], w_ref[...],
                            preferred_element_type=jnp.float32)

    @pl.when(k == nk - 1)
    def _epilogue():
        scale = scal_ref[0]
        lr_mul = scal_ref[1]
        c = scal_ref[2]
        sqrt_c = jnp.sqrt(c)
        inv_sqrt_c = 1.0 / sqrt_c                        # scalar, negligible

        bias = b_ref[...].astype(jnp.float32)            # (1, dout_pad)
        out = acc_ref[...] * scale + bias * lr_mul       # F.linear epilogue

        # pmath.expmap0(out, c): tanh(sqrt_c*||u||) * u / (sqrt_c*||u||)
        u_norm = jnp.sqrt(jnp.sum(out * out, axis=-1, keepdims=True))
        denom = sqrt_c * jnp.maximum(u_norm, _MIN_NORM)
        t = jnp.tanh(denom)
        out = (t / denom) * out          # exact (tb,1) divide; epilogue-only

        # pmath.project(out, c): after expmap0, ||out|| == tanh(denom)/sqrt_c
        # exactly, so the second cross-lane reduction is not needed.  The
        # rescale uses an exact divide so clamped points stay inside the ball.
        norm = jnp.maximum(t * inv_sqrt_c, _MIN_NORM)
        maxnorm = (1.0 - _BALL_EPS) * inv_sqrt_c
        projected = out * (maxnorm / norm)
        out = jnp.where(norm > maxnorm, projected, out)

        o_ref[...] = out.astype(o_ref.dtype)


def mix_hyp_equal_linear(x, weight, bias, *, c, lr_mul=1.0, tb=256, tk=None):
    """x: (B, Din); weight: (Dout, Din) (PyTorch layout); bias: (Dout,)."""
    B, Din = x.shape
    Dout, Din_w = weight.shape
    assert Din == Din_w
    assert bias.shape == (Dout,)

    scale = (1.0 / math.sqrt(Din)) * lr_mul
    scalars = jnp.array([scale, lr_mul, c], dtype=jnp.float32)

    vmem_cap, num_tc = _tpu_caps()

    dout_pad = _round_up(Dout, 128)      # lane-dense output (unmasked stores)
    din_al = _round_up(Din, 128)
    b_al = _round_up(B, 8)

    # Batch tile: as large as requested/needed; on multi-TC chips (v7x) keep
    # at least num_tc batch programs so the "parallel" axis feeds both cores.
    tb = min(_round_up(tb, 8), b_al)
    if num_tc > 1 and b_al > 8 and _cdiv(b_al, tb) < num_tc:
        tb = _round_up(_cdiv(b_al, num_tc), 8)

    # K tile: start at the full padded Din (fewest accumulator sweeps / grid
    # steps) and shrink to fit ~70% of this generation's physical VMEM
    # (128 MiB v5e/v6e, 64 MiB v7x) given double-buffered tiles.
    x_isz = jnp.dtype(x.dtype).itemsize
    w_isz = jnp.dtype(weight.dtype).itemsize
    o_isz = x_isz
    tk = din_al if tk is None else min(_round_up(tk, 128), din_al)

    def _est(tb_, tk_):
        return (2 * tb_ * tk_ * x_isz            # x tiles (double-buffered)
                + 2 * tk_ * dout_pad * w_isz     # W tiles (double-buffered)
                + 2 * dout_pad * w_isz           # bias
                + 2 * tb_ * dout_pad * o_isz     # out tiles
                + tb_ * dout_pad * 4)            # f32 accumulator

    budget = int(0.70 * vmem_cap)
    while _est(tb, tk) > budget and tk > 128:
        tk = _round_up(tk // 2, 128)
    while _est(tb, tk) > budget and tb > 8:
        tb = max(8, _round_up(tb // 2, 8))
    # TODO(synk): for extremely large Dout where even tk=128 / tb=8 overflows
    # VMEM a Dout (N) grid axis with a two-pass norm would be needed.

    b_pad = _round_up(B, tb)
    din_pad = _round_up(Din, tk)

    # Zero padding is an exact no-op for this math (zero batch rows, zero
    # K-columns and zero output-columns all contribute nothing); the pad is
    # sliced off below.  Padding is skipped when shapes are already aligned.
    x_p = x if (b_pad, din_pad) == (B, Din) else jnp.pad(
        x, ((0, b_pad - B), (0, din_pad - Din)))
    # NOTE: for a weight that is static across training steps, hoist this
    # transpose+pad out of the per-step jit -- it is a full HBM pass over W.
    w_t = weight.T                                      # (Din, Dout)
    if (din_pad, dout_pad) != (Din, Dout):
        w_t = jnp.pad(w_t, ((0, din_pad - Din), (0, dout_pad - Dout)))
    b_p = bias if dout_pad == Dout else jnp.pad(bias, (0, dout_pad - Dout))
    b_p = b_p.reshape(1, dout_pad)

    grid = (b_pad // tb, din_pad // tk)

    est = _est(tb, tk)
    vmem_limit = int(min(max(int(1.5 * est), 32 * 1024 * 1024),
                         int(0.9 * vmem_cap)))

    out_p = pl.pallas_call(
        _mix_hyp_equal_linear_kernel,
        out_shape=jax.ShapeDtypeStruct((b_pad, dout_pad), x.dtype),
        grid_spec=pltpu.PrefetchScalarGridSpec(
            num_scalar_prefetch=1,
            grid=grid,
            in_specs=[
                pl.BlockSpec((tb, tk), lambda i, k, s: (i, k)),          # x
                pl.BlockSpec((tk, dout_pad), lambda i, k, s: (k, 0)),    # W^T
                pl.BlockSpec((1, dout_pad), lambda i, k, s: (0, 0)),     # bias
            ],
            out_specs=pl.BlockSpec((tb, dout_pad), lambda i, k, s: (i, 0)),
            scratch_shapes=[pltpu.VMEM((tb, dout_pad), jnp.float32)],
        ),
        compiler_params=pltpu.CompilerParams(
            dimension_semantics=("parallel", "arbitrary"),
            vmem_limit_bytes=vmem_limit),
    )(scalars, x_p, w_t, b_p)

    return out_p[:B, :Dout]


def _reference(x, weight, bias, *, c, lr_mul=1.0):
    """Pure-JAX reference mirroring the PyTorch forward (activation=None)."""
    Din = x.shape[-1]
    scale = (1.0 / math.sqrt(Din)) * lr_mul
    out = x @ (weight * scale).T + bias * lr_mul
    sqrt_c = jnp.sqrt(jnp.float32(c))
    u_norm = jnp.maximum(jnp.linalg.norm(out, axis=-1, keepdims=True), _MIN_NORM)
    out = jnp.tanh(sqrt_c * u_norm) * out / (sqrt_c * u_norm)
    norm = jnp.maximum(jnp.linalg.norm(out, axis=-1, keepdims=True), _MIN_NORM)
    maxnorm = (1.0 - _BALL_EPS) / sqrt_c
    return jnp.where(norm > maxnorm, out / norm * maxnorm, out)


if __name__ == "__main__":
    key = jax.random.PRNGKey(0)
    kx, kw, kb = jax.random.split(key, 3)

    B, Din, Dout = 16, 32, 48
    lr_mul = 1.0
    c = 1.0

    x = jax.random.normal(kx, (B, Din), dtype=jnp.float32)
    # nn.Parameter(torch.randn(out, in).div_(lr_mul))
    weight = jax.random.normal(kw, (Dout, Din), dtype=jnp.float32) / lr_mul
    # nn.Parameter(torch.zeros(out)) at init; use a small nonzero value here so
    # the bias path is actually exercised by the check.
    bias = 0.1 * jax.random.normal(kb, (Dout,), dtype=jnp.float32)

    out = mix_hyp_equal_linear(x, weight, bias, c=c, lr_mul=lr_mul)
    out = jax.block_until_ready(out)

    ref = _reference(x, weight, bias, c=c, lr_mul=lr_mul)
    assert out.shape == (B, Dout)
    # Exact divides in the epilogue -> tolerance only covers matmul
    # accumulation-order / MXU precision differences.
    assert jnp.allclose(out, ref, atol=1e-4, rtol=1e-4), (
        float(jnp.max(jnp.abs(out - ref))))

    print("KERNEL_OK")
</pallas_src>

<mosaic_0001>
module attributes {stable_mosaic.version = 11 : i64} {
  func.func @_mix_hyp_equal_linear_kernel(%arg0: i32, %arg1: i32, %arg2: memref<3xf32, #tpu.memory_space<smem>>, %arg3: memref<16x128xf32, #tpu.memory_space<vmem>>, %arg4: memref<128x128xf32, #tpu.memory_space<vmem>>, %arg5: memref<1x128xf32, #tpu.memory_space<vmem>>, %arg6: memref<16x128xf32, #tpu.memory_space<vmem>>, %arg7: memref<16x128xf32, #tpu.memory_space<vmem>>) attributes {dimension_semantics = [#tpu.dimension_semantics<parallel>, #tpu.dimension_semantics<arbitrary>], iteration_bounds = array<i64: 1, 1>, scalar_prefetch = 1 : i64, scratch_operands = 1 : i64, tpu.core_type = #tpu.core_type<tc>, window_params = [{transform_indices = @transform_0, window_bounds = array<i64: 16, 128>}, {transform_indices = @transform_1, window_bounds = array<i64: 128, 128>}, {pipeline_mode = #tpu.pipeline_mode<synchronous>, transform_indices = @transform_2, window_bounds = array<i64: 1, 128>}, {transform_indices = @transform_3, window_bounds = array<i64: 16, 128>}]} {
    %c0_i32 = arith.constant 0 : i32
    %0 = arith.cmpi eq, %arg1, %c0_i32 : i32
    %1 = arith.extui %0 : i1 to i32
    %c0_i32_0 = arith.constant 0 : i32
    %2 = arith.cmpi ne, %1, %c0_i32_0 : i32
    scf.if %2 {
      %cst_10 = arith.constant 0.000000e+00 : f32
      %12 = vector.broadcast %cst_10 : f32 to vector<16x128xf32>
      %c0_11 = arith.constant 0 : index
      %c0_12 = arith.constant 0 : index
      %13 = vector.load %arg7[%c0_11, %c0_12] : memref<16x128xf32, #tpu.memory_space<vmem>>, vector<16x128xf32>
      tpu.vector_store %arg7[%c0_11, %c0_12], %12 {strides = array<i32>} : memref<16x128xf32, #tpu.memory_space<vmem>>, vector<16x128xf32>,
    } else {
    }
    %c0 = arith.constant 0 : index
    %c0_1 = arith.constant 0 : index
    %3 = vector.load %arg7[%c0, %c0_1] : memref<16x128xf32, #tpu.memory_space<vmem>>, vector<16x128xf32>
    %c0_2 = arith.constant 0 : index
    %c0_3 = arith.constant 0 : index
    %4 = vector.load %arg3[%c0_2, %c0_3] : memref<16x128xf32, #tpu.memory_space<vmem>>, vector<16x128xf32>
    %c0_4 = arith.constant 0 : index
    %c0_5 = arith.constant 0 : index
    %5 = vector.load %arg4[%c0_4, %c0_5] : memref<128x128xf32, #tpu.memory_space<vmem>>, vector<128x128xf32>
    %cst = arith.constant dense<0.000000e+00> : vector<16x128xf32>
    %6 = tpu.matmul %4, %5, %cst {dimension_numbers = #tpu.dot_dimension_numbers<[1], [0], [0], [1], [0, 0, 1, 1], [], []>} : vector<16x128xf32>, vector<128x128xf32>, vector<16x128xf32> -> vector<16x128xf32>
    %7 = arith.addf %3, %6 : vector<16x128xf32>
    %c0_6 = arith.constant 0 : index
    %c0_7 = arith.constant 0 : index
    %8 = vector.load %arg7[%c0_6, %c0_7] : memref<16x128xf32, #tpu.memory_space<vmem>>, vector<16x128xf32>
    tpu.vector_store %arg7[%c0_6, %c0_7], %7 {strides = array<i32>} : memref<16x128xf32, #tpu.memory_space<vmem>>, vector<16x128xf32>,
    %c0_i32_8 = arith.constant 0 : i32
    %9 = arith.cmpi eq, %arg1, %c0_i32_8 : i32
    %10 = arith.extui %9 : i1 to i32
    %c0_i32_9 = arith.constant 0 : i32
    %11 = arith.cmpi ne, %10, %c0_i32_9 : i32
    scf.if %11 {
      %c0_10 = arith.constant 0 : index
      %12 = memref.load %arg2[%c0_10] : memref<3xf32, #tpu.memory_space<smem>>
      %c1 = arith.constant 1 : index
      %13 = memref.load %arg2[%c1] : memref<3xf32, #tpu.memory_space<smem>>
      %c2 = arith.constant 2 : index
      %14 = memref.load %arg2[%c2] : memref<3xf32, #tpu.memory_space<smem>>
      %15 = math.sqrt %14 : f32
      %cst_11 = arith.constant 1.000000e+00 : f32
      %16 = arith.divf %cst_11, %15 : f32
      %c0_12 = arith.constant 0 : index
      %c0_13 = arith.constant 0 : index
      %17 = vector.load %arg5[%c0_12, %c0_13] : memref<1x128xf32, #tpu.memory_space<vmem>>, vector<1x128xf32>
      %c0_14 = arith.constant 0 : index
      %c0_15 = arith.constant 0 : index
      %18 = vector.load %arg7[%c0_14, %c0_15] : memref<16x128xf32, #tpu.memory_space<vmem>>, vector<16x128xf32>
      %19 = vector.broadcast %12 : f32 to vector<16x128xf32>
      %20 = arith.mulf %18, %19 : vector<16x128xf32>
      %21 = vector.broadcast %13 : f32 to vector<1x128xf32>
      %22 = arith.mulf %17, %21 : vector<1x128xf32>
      %23 = vector.broadcast %22 : vector<1x128xf32> to vector<16x128xf32>
      %24 = arith.addf %20, %23 : vector<16x128xf32>
      %25 = arith.mulf %24, %24 : vector<16x128xf32>
      %cst_16 = arith.constant dense<0.000000e+00> : vector<16xf32>
      %26 = vector.multi_reduction <add>, %25, %cst_16 [1] : vector<16x128xf32> to vector<16xf32>
      %27 = vector.shape_cast %26 : vector<16xf32> to vector<16x1xf32>
      %28 = math.sqrt %27 : vector<16x1xf32>
      %cst_17 = arith.constant 9.99999974E-6 : f32
      %29 = vector.broadcast %cst_17 : f32 to vector<16x1xf32>
      %30 = arith.maximumf %28, %29 : vector<16x1xf32>
      %31 = vector.broadcast %15 : f32 to vector<16x1xf32>
      %32 = arith.mulf %31, %30 : vector<16x1xf32>
      %33 = math.tanh %32 : vector<16x1xf32>
      %34 = arith.divf %33, %32 : vector<16x1xf32>
      %35 = vector.broadcast %34 : vector<16x1xf32> to vector<16x128xf32>
      %36 = arith.mulf %35, %24 : vector<16x128xf32>
      %37 = vector.broadcast %16 : f32 to vector<16x1xf32>
      %38 = arith.mulf %33, %37 : vector<16x1xf32>
      %cst_18 = arith.constant 9.99999974E-6 : f32
      %39 = vector.broadcast %cst_18 : f32 to vector<16x1xf32>
      %40 = arith.maximumf %38, %39 : vector<16x1xf32>
      %cst_19 = arith.constant 9.990000e-01 : f32
      %41 = arith.mulf %cst_19, %16 : f32
      %42 = vector.broadcast %41 : f32 to vector<16x1xf32>
      %43 = arith.divf %42, %40 : vector<16x1xf32>
      %44 = vector.broadcast %43 : vector<16x1xf32> to vector<16x128xf32>
      %45 = arith.mulf %36, %44 : vector<16x128xf32>
      %46 = vector.broadcast %41 : f32 to vector<16x1xf32>
      %47 = arith.cmpf ogt, %40, %46 : vector<16x1xf32>
      %48 = vector.shape_cast %47 : vector<16x1xi1> to vector<16x1xi1>
      %49 = vector.broadcast %48 : vector<16x1xi1> to vector<16x128xi1>
      %50 = arith.select %49, %45, %36 : vector<16x128xi1>, vector<16x128xf32>
      %c0_20 = arith.constant 0 : index
      %c0_21 = arith.constant 0 : index
      %51 = vector.load %arg6[%c0_20, %c0_21] : memref<16x128xf32, #tpu.memory_space<vmem>>, vector<16x128xf32>
      tpu.vector_store %arg6[%c0_20, %c0_21], %50 {strides = array<i32>} : memref<16x128xf32, #tpu.memory_space<vmem>>, vector<16x128xf32>,
    } else {
    }
    return
  }
  func.func @transform_0(%arg0: i32, %arg1: i32, %arg2: memref<3xf32, #tpu.memory_space<smem>>) -> (i32, i32) {
    %c0_i32 = arith.constant 0 : i32
    return %arg0, %arg1 : i32, i32
  }
  func.func @transform_1(%arg0: i32, %arg1: i32, %arg2: memref<3xf32, #tpu.memory_space<smem>>) -> (i32, i32) {
    %c0_i32 = arith.constant 0 : i32
    %c0_i32_0 = arith.constant 0 : i32
    return %arg1, %c0_i32 : i32, i32
  }
  func.func @transform_2(%arg0: i32, %arg1: i32, %arg2: memref<3xf32, #tpu.memory_space<smem>>) -> (i32, i32) {
    %c0_i32 = arith.constant 0 : i32
    %c0_i32_0 = arith.constant 0 : i32
    %c0_i32_1 = arith.constant 0 : i32
    return %c0_i32, %c0_i32_0 : i32, i32
  }
  func.func @transform_3(%arg0: i32, %arg1: i32, %arg2: memref<3xf32, #tpu.memory_space<smem>>) -> (i32, i32) {
    %c0_i32 = arith.constant 0 : i32
    %c0_i32_0 = arith.constant 0 : i32
    return %arg0, %c0_i32 : i32, i32
  }
}

</mosaic_0001>

<llo_original>
// kernel: tpu_custom_call.1
$region0: #{tpu_custom_call.1}
  #allocation0 [shape = 'u32[]', space=smem, size = 0x4, offset = 0x4, fixed_abs, tag = 'smem constant byte address 0x4 - core index']
  #allocation1 [shape = 'u32[72,128]{1,0:T(1,128)}', space=vmem, size = 0x9000, scoped, tag = 'internal scratch']
  #allocation2 [shape = 'f32[16,128]{1,0:T(8,128)}', space=vmem, size = 0x2000, scoped, tag = 'scratch operand']
  #allocation3 [shape = 's32[1]{0}', space=sflag, size = 0x4, scoped, tag = 'scoped memory for tpu_custom_call.1']
  #allocation4 [shape = 'u8[512]{0}', space=smem, size = 0x200, scoped, tag = 'prefetched SMEM operand 0']
  %s0 = inlined_call_operand.hbm [shape: f32[3], index: 0, kind: input, shape index: {}]
  %s1 = inlined_call_operand.hbm [shape: f32[16,128], index: 1, kind: input, shape index: {}]
  %s2 = inlined_call_operand.hbm [shape: f32[128,128], index: 2, kind: input, shape index: {}]
  %s3 = inlined_call_operand.vmem [shape: f32[1,128], index: 3, kind: input, shape index: {}]
  %s4 = inlined_call_operand.hbm [shape: f32[16,128], index: 4, kind: output, shape index: {}]
  %s5 = sld [smem:[#allocation0]]
  $region38: #{tpu_custom_call.1} parent=0
    _
  %s7 = ssub.s32 1, %s5
  %s8 = scalar_select 0, %s7, %s5
  %s10 = sshll.u32 %s0, 4
  %s11 = int_to_ptr.hbm [resolvable:$true] %s10
  %13 = dma.hbm_to_smem %s11, 16, [#allocation4], [#allocation3]
  %15 = dma.done [#allocation3], 16
  %16 = sfence
  $region1: #{tpu_custom_call.1} parent=0
    #allocation5 [shape = 'u8[8192]{0}', space=vmem, size = 0x2000, scoped, tag = 'input window, operand 1, single buffered']
    #allocation6 [shape = 's32[1]{0}', space=sflag, size = 0x4, scoped, tag = 'scoped memory for tpu_custom_call.1']
    #allocation7 [shape = 's32[1]{0}', space=sflag, size = 0x4, scoped, tag = 'scoped memory for tpu_custom_call.1']
    #allocation8 [shape = 'u8[65536]{0}', space=vmem, size = 0x10000, scoped, tag = 'input window, operand 2, single buffered']
    #allocation9 [shape = 's32[1]{0}', space=sflag, size = 0x4, scoped, tag = 'scoped memory for tpu_custom_call.1']
    #allocation10 [shape = 'u8[8192]{0}', space=vmem, size = 0x2000, scoped, tag = 'output window, operand 0, single buffered']
    %17 = vsyncpa [#allocation6], 0
    %18 = vsyncpa [#allocation9], 0
    %19 = vsyncpa [#allocation7], 0
    // Predicated region
    $region2: #{tpu_custom_call.1} parent=1 // pred_check
      _
    $region3: #{tpu_custom_call.1} parent=1 // pred_check_branch
      %21 = sbr.rel (0) target = $region5
    $region4: #{tpu_custom_call.1} parent=1 // pred_region
      %23 = vsyncadd [#allocation6], 0
      %s24 = sshll.u32 %s1, 4
      %s25 = int_to_ptr.hbm [resolvable:$true] %s24
      %s26 = sshll.u32 [#allocation5], 4
      %s27 = int_to_ptr.vmem [resolvable:$true] %s26
      %32 = dma.hbm_to_vmem [thread:$0]  %s25, 256, %s27, [#allocation6], 128, 128, 8
    $region5: #{tpu_custom_call.1} parent=1 // pred_fallthru
      _
    // Predicated region
    $region6: #{tpu_custom_call.1} parent=1 // pred_check
      _
    $region7: #{tpu_custom_call.1} parent=1 // pred_check_branch
      %34 = sbr.rel (0) target = $region9
    $region8: #{tpu_custom_call.1} parent=1 // pred_region
      %36 = vsyncadd [#allocation9], 0
      %s37 = sshll.u32 %s2, 4
      %s38 = int_to_ptr.hbm [resolvable:$true] %s37
      %s39 = sshll.u32 [#allocation8], 4
      %s40 = int_to_ptr.vmem [resolvable:$true] %s39
      %45 = dma.hbm_to_vmem [thread:$0]  %s38, 2048, %s40, [#allocation9], 128, 128, 8
    $region9: #{tpu_custom_call.1} parent=1 // pred_fallthru
      _
    // Predicated region
    $region10: #{tpu_custom_call.1} parent=1 // pred_check
      _
    $region11: #{tpu_custom_call.1} parent=1 // pred_check_branch
      %47 = sbr.rel (0) target = $region13
    $region12: #{tpu_custom_call.1} parent=1 // pred_region
      _
    $region13: #{tpu_custom_call.1} parent=1 // pred_fallthru
      _
    // Predicated region
    $region14: #{tpu_custom_call.1} parent=1 // pred_check
      _
    $region15: #{tpu_custom_call.1} parent=1 // pred_check_branch
      %49 = sbr.rel (0) target = $region17
    $region16: #{tpu_custom_call.1} parent=1 // pred_region
      %51 = dma.done [#allocation6], 256
    $region17: #{tpu_custom_call.1} parent=1 // pred_fallthru
      _
    // Predicated region
    $region18: #{tpu_custom_call.1} parent=1 // pred_check
      _
    $region19: #{tpu_custom_call.1} parent=1 // pred_check_branch
      %53 = sbr.rel (0) target = $region21
    $region20: #{tpu_custom_call.1} parent=1 // pred_region
      %55 = dma.done [#allocation9], 2048
    $region21: #{tpu_custom_call.1} parent=1 // pred_fallthru
      _
    %p56 = scmp.eq.s32.totalorder 0, 0
    // Predicated region
    $region22: #{tpu_custom_call.1} parent=1 // pred_check
      %p57 = pneg %p56
    $region23: #{tpu_custom_call.1} parent=1 // pred_check_branch
      %59 = sbr.rel (%p57) target = $region25
    $region24: #{tpu_custom_call.1} parent=1 // pred_region
      %60 = vst [vmem:[#allocation2] sm:$0xff] 0.0
      %61 = vst [vmem:[#allocation2 + $0x8] sm:$0xff] 0.0
    $region25: #{tpu_custom_call.1} parent=1 // pred_fallthru
      _
    %v62 = vld [vmem:[#allocation2] sm:$0xff]
    %v63 = vld [vmem:[#allocation2 + $0x8] sm:$0xff]
    %v64 = vld [vmem:[#allocation5] sm:$0xff]
    %v65 = vld [vmem:[#allocation5 + $0x8] sm:$0xff]
    %v66 = vld [vmem:[#allocation8] sm:$0xff]
    %v67 = vld [vmem:[#allocation8 + $0x8] sm:$0xff]
    %v68 = vld [vmem:[#allocation8 + $0x10] sm:$0xff]
    %v69 = vld [vmem:[#allocation8 + $0x18] sm:$0xff]
    %v70 = vld [vmem:[#allocation8 + $0x20] sm:$0xff]
    %v71 = vld [vmem:[#allocation8 + $0x28] sm:$0xff]
    %v72 = vld [vmem:[#allocation8 + $0x30] sm:$0xff]
    %v73 = vld [vmem:[#allocation8 + $0x38] sm:$0xff]
    %v74 = vld [vmem:[#allocation8 + $0x40] sm:$0xff]
    %v75 = vld [vmem:[#allocation8 + $0x48] sm:$0xff]
    %v76 = vld [vmem:[#allocation8 + $0x50] sm:$0xff]
    %v77 = vld [vmem:[#allocation8 + $0x58] sm:$0xff]
    %v78 = vld [vmem:[#allocation8 + $0x60] sm:$0xff]
    %v79 = vld [vmem:[#allocation8 + $0x68] sm:$0xff]
    %v80 = vld [vmem:[#allocation8 + $0x70] sm:$0xff]
    %v81 = vld [vmem:[#allocation8 + $0x78] sm:$0xff]
    %82 = vmatpush.msra.mxu0 %v81
    %83 = vmatpush.msra.mxu0 %v80
    %84 = vmatpush.msra.mxu0 %v79
    %85 = vmatpush.msra.mxu0 %v78
    %86 = vmatpush.msra.mxu0 %v77
    %87 = vmatpush.msra.mxu0 %v76
    %88 = vmatpush.msra.mxu0 %v75
    %89 = vmatpush.msra.mxu0 %v74
    %90 = vmatpush.msra.mxu0 %v73
    %91 = vmatpush.msra.mxu0 %v72
    %92 = vmatpush.msra.mxu0 %v71
    %93 = vmatpush.msra.mxu0 %v70
    %94 = vmatpush.msra.mxu0 %v69
    %95 = vmatpush.msra.mxu0 %v68
    %96 = vmatpush.msra.mxu0 %v67
    %97 = vmatpush.msra.mxu0 %v66
    %98 = vmatmul.f32.gmra.mxu0 %v64
    %v99 = vpop.f32.mrf.mxu0
    %v100 = vadd.f32 0.0, %v99
    %101 = vmatmul.f32.gmra.mxu0 %v65
    %v102 = vpop.f32.mrf.mxu0
    %v103 = vadd.f32 0.0, %v102
    %104 = vdwg.mxu0
    %v105 = vadd.f32 %v62, %v100
    %v106 = vadd.f32 %v63, %v103
    %107 = vst [vmem:[#allocation2] sm:$0xff] %v105
    %108 = vst [vmem:[#allocation2 + $0x8] sm:$0xff] %v106
    // Predicated region
    $region26: #{tpu_custom_call.1} parent=1 // pred_check
      %p109 = pneg %p56
    $region27: #{tpu_custom_call.1} parent=1 // pred_check_branch
      %111 = sbr.rel (%p109) target = $region29
    $region28: #{tpu_custom_call.1} parent=1 // pred_region
      %s112 = sld [smem:[#allocation4]]
      %s113 = sld [smem:[#allocation4 + $0x1]]
      %s114 = sld [smem:[#allocation4 + $0x2]]
      %v115 = vstv %s114
      %v116 = vrsqrt.pop %v115
      %v117 = vmul.f32 %v116, %v115
      %v118 = vmul.f32 %v117, %v116
      %v119 = vmul.f32 0.5, %v118
      %v120 = vsub.f32 1.5, %v119
      %v121 = vmul.f32 %v116, %v120
      %v122 = vmul.f32 %v115, %v121
      %vm123 = vcmp.eq.f32.partialorder %v115, inf
      %v124 = vsel %vm123, %v115, %v122
      %vm125 = vcmp.eq.f32.partialorder %v115, 0.0
      %v126 = vand.u32 %v115, 2147483648
      %v127 = vsel %vm125, %v126, %v124
      %s128 = vtos %v127
      %v129 = vstv %s128
      %v130 = vrcp.pop %v129
      %v131 = vmul.f32 %v129, %v130
      %v132 = vsub.f32 1.0, %v131
      %v133 = vmul.f32 %v130, %v132
      %v134 = vadd.f32 %v130, %v133
      %vm135 = vweird.f32 %v129
      %vm136 = vweird.f32 %v130
      %vm137 = vmor %vm135, %vm136
      %v138 = vsel %vm137, %v130, %v134
      %v139 = vand.u32 2147483647, %v129
      %vm140 = vcmp.eq.f32.partialorder %v139, 8.507059e+37
      %v141 = vand.u32 %v129, 2147483648
      %v142 = vor.u32 1.1754944e-38, %v141
      %v143 = vsel %vm140, %v142, %v138
      %s144 = vtos %v143
      %v145 = vld [vmem:[%s3] sm:$0x1]
      %v146 = vld [vmem:[#allocation2] sm:$0xff]
      %v147 = vld [vmem:[#allocation2 + $0x8] sm:$0xff]
      %v148 = vstv %s112
      %v149 = vmul.f32 %v146, %v148
      %v150 = vmul.f32 %v147, %v148
      %v151 = vstv %s113
      %v152 = vmul.f32 %v145, %v151
      %v154 = vperm.slane %v152, 0
      %v156 = vadd.f32 %v149, %v154
      %v157 = vadd.f32 %v150, %v154
      %v158 = vmul.f32 %v156, %v156
      %v159 = vmul.f32 %v157, %v157
      %160 = vadd.xlane.f32.xlu0 %v158
      %v161 = vpop.xlane.xlu0 %160
      %162 = vadd.xlane.f32.xlu0 %v159
      %v163 = vpop.xlane.xlu0 %162
      %v164 = vrsqrt.pop %v161
      %v165 = vmul.f32 %v164, %v161
      %v166 = vmul.f32 %v165, %v164
      %v167 = vmul.f32 0.5, %v166
      %v168 = vsub.f32 1.5, %v167
      %v169 = vmul.f32 %v164, %v168
      %v170 = vmul.f32 %v161, %v169
      %vm171 = vcmp.eq.f32.partialorder %v161, inf
      %v172 = vsel %vm171, %v161, %v170
      %vm173 = vcmp.eq.f32.partialorder %v161, 0.0
      %v174 = vand.u32 %v161, 2147483648
      %v175 = vsel %vm173, %v174, %v172
      %v176 = vrsqrt.pop %v163
      %v177 = vmul.f32 %v176, %v163
      %v178 = vmul.f32 %v177, %v176
      %v179 = vmul.f32 0.5, %v178
      %v180 = vsub.f32 1.5, %v179
      %v181 = vmul.f32 %v176, %v180
      %v182 = vmul.f32 %v163, %v181
      %vm183 = vcmp.eq.f32.partialorder %v163, inf
      %v184 = vsel %vm183, %v163, %v182
      %vm185 = vcmp.eq.f32.partialorder %v163, 0.0
      %v186 = vand.u32 %v163, 2147483648
      %v187 = vsel %vm185, %v186, %v184
      %v188 = vmax.f32 %v175, 1e-05
      %v189 = vmax.f32 %v187, 1e-05
      %v190 = vstv %s128
      %v191 = vmul.f32 %v190, %v188
      %v192 = vmul.f32 %v190, %v189
      %v193 = vtanh.pop %v191
      %v194 = vtanh.pop %v192
      %v195 = vrcp.pop %v191
      %v196 = vmul.f32 %v191, %v195
      %v197 = vsub.f32 1.0, %v196
      %v198 = vmul.f32 %v195, %v197
      %v199 = vadd.f32 %v195, %v198
      %vm200 = vweird.f32 %v191
      %vm201 = vweird.f32 %v195
      %vm202 = vmor %vm200, %vm201
      %v203 = vsel %vm202, %v195, %v199
      %v204 = vand.u32 2147483647, %v191
      %vm205 = vcmp.eq.f32.partialorder %v204, 8.507059e+37
      %v206 = vand.u32 %v191, 2147483648
      %v207 = vor.u32 1.1754944e-38, %v206
      %v208 = vsel %vm205, %v207, %v203
      %v209 = vmul.f32 %v193, %v208
      %v210 = vrcp.pop %v192
      %v211 = vmul.f32 %v192, %v210
      %v212 = vsub.f32 1.0, %v211
      %v213 = vmul.f32 %v210, %v212
      %v214 = vadd.f32 %v210, %v213
      %vm215 = vweird.f32 %v192
      %vm216 = vweird.f32 %v210
      %vm217 = vmor %vm215, %vm216
      %v218 = vsel %vm217, %v210, %v214
      %v219 = vand.u32 2147483647, %v192
      %vm220 = vcmp.eq.f32.partialorder %v219, 8.507059e+37
      %v221 = vand.u32 %v192, 2147483648
      %v222 = vor.u32 1.1754944e-38, %v221
      %v223 = vsel %vm220, %v222, %v218
      %v224 = vmul.f32 %v194, %v223
      %v225 = vmul.f32 %v209, %v156
      %v226 = vmul.f32 %v224, %v157
      %v227 = vstv %s144
      %v228 = vmul.f32 %v193, %v227
      %v229 = vmul.f32 %v194, %v227
      %v230 = vmax.f32 %v228, 1e-05
      %v231 = vmax.f32 %v229, 1e-05
      %s232 = smul.f32 %s144, 0.999
      %v233 = vstv %s232
      %v234 = vrcp.pop %v230
      %v235 = vmul.f32 %v230, %v234
      %v236 = vsub.f32 1.0, %v235
      %v237 = vmul.f32 %v234, %v236
      %v238 = vadd.f32 %v234, %v237
      %vm239 = vweird.f32 %v230
      %vm240 = vweird.f32 %v234
      %vm241 = vmor %vm239, %vm240
      %v242 = vsel %vm241, %v234, %v238
      %v243 = vand.u32 2147483647, %v230
      %vm244 = vcmp.eq.f32.partialorder %v243, 8.507059e+37
      %v245 = vand.u32 %v230, 2147483648
      %v246 = vor.u32 1.1754944e-38, %v245
      %v247 = vsel %vm244, %v246, %v242
      %v248 = vmul.f32 %v233, %v247
      %v249 = vrcp.pop %v231
      %v250 = vmul.f32 %v231, %v249
      %v251 = vsub.f32 1.0, %v250
      %v252 = vmul.f32 %v249, %v251
      %v253 = vadd.f32 %v249, %v252
      %vm254 = vweird.f32 %v231
      %vm255 = vweird.f32 %v249
      %vm256 = vmor %vm254, %vm255
      %v257 = vsel %vm256, %v249, %v253
      %v258 = vand.u32 2147483647, %v231
      %vm259 = vcmp.eq.f32.partialorder %v258, 8.507059e+37
      %v260 = vand.u32 %v231, 2147483648
      %v261 = vor.u32 1.1754944e-38, %v260
      %v262 = vsel %vm259, %v261, %v257
      %v263 = vmul.f32 %v233, %v262
      %v264 = vmul.f32 %v225, %v248
      %v265 = vmul.f32 %v226, %v263
      %vm266 = vcmp.gt.f32.partialorder %v230, %v233
      %vm267 = vcmp.gt.f32.partialorder %v231, %v233
      %v268 = vsel %vm266, 1, 0
      %v269 = vsel %vm267, 1, 0
      %vm270 = vcmp.eq.s32.totalorder %v268, 1
      %vm271 = vcmp.eq.s32.totalorder %v269, 1
      %v272 = vsel %vm270, %v264, %v225
      %v273 = vsel %vm271, %v265, %v226
      %274 = vst [vmem:[#allocation10] sm:$0xff] %v272
      %275 = vst [vmem:[#allocation10 + $0x8] sm:$0xff] %v273
    $region29: #{tpu_custom_call.1} parent=1 // pred_fallthru
      _
    // Predicated region
    $region30: #{tpu_custom_call.1} parent=1 // pred_check
      _
    $region31: #{tpu_custom_call.1} parent=1 // pred_check_branch
      %277 = sbr.rel (0) target = $region33
    $region32: #{tpu_custom_call.1} parent=1 // pred_region
      %279 = vsyncadd [#allocation7], 0
      %s280 = sshll.u32 [#allocation10], 4
      %s281 = int_to_ptr.vmem [resolvable:$true] %s280
      %s282 = sshll.u32 %s4, 4
      %s283 = int_to_ptr.hbm [resolvable:$true] %s282
      %288 = dma.vmem_to_hbm [thread:$0]  %s281, 256, %s283, [#allocation7], 128, 128, 8
    $region33: #{tpu_custom_call.1} parent=1 // pred_fallthru
      _
    // Predicated region
    $region34: #{tpu_custom_call.1} parent=1 // pred_check
      _
    $region35: #{tpu_custom_call.1} parent=1 // pred_check_branch
      %290 = sbr.rel (0) target = $region37
    $region36: #{tpu_custom_call.1} parent=1 // pred_region
      %292 = dma.done [#allocation7], 256
    $region37: #{tpu_custom_call.1} parent=1 // pred_fallthru
      _
    %293 = vsyncpa [#allocation6], 1
    %294 = vsyncpa [#allocation9], 1
    %295 = vsyncpa [#allocation7], 1

</llo_original>
